<compile_context>
chip_gen: v7x
topology: tpu7x:2x2x1
jax: 0.10.0
libtpu: 0.0.40
codegen_flags: <defaults>
</compile_context>

<pallas_src>
import jax
import jax.numpy as jnp
from jax.experimental import pallas as pl
from jax.experimental.pallas import tpu as pltpu


def _global_mvn_kernel(params_ref, x_ref, o_ref):
    # params_ref: (2, W) float32   row 0 = scale (inv_std, tiled `group` times)
    #                              row 1 = bias  (-mean * inv_std, tiled)
    # x_ref:      (tile_r, W) input tile
    # o_ref:      (tile_r, W) output tile (out_dtype)
    scale = params_ref[0:1, :]                 # (1, W) -> broadcasts over rows
    bias = params_ref[1:2, :]                  # (1, W)
    x = x_ref[...].astype(jnp.float32)
    o_ref[...] = (x * scale + bias).astype(o_ref.dtype)   # fused (x - mean) * inv_std


def _largest_pow2_group(n, max_group):
    g = max_group
    while g > 1 and n % g != 0:
        g //= 2
    return max(g, 1)


def global_mvn(x, mean, inv_std, ilens=None, *, max_group=16,
               target_block_bytes=5 * 1024 * 1024, out_dtype=jnp.float32):
    """(x - mean) * inv_std over the last dim. Returns (y.astype(out_dtype), ilens)."""
    B, L, D = x.shape
    N = B * L

    # ---- Lane-dense packing (zero-copy) ------------------------------------
    group = _largest_pow2_group(N, max_group)  # largest pow2 <= max_group dividing N
    W = group * D                              # packed lane width (640/1280 when 8|N)
    R = N // group                             # packed rows
    x2 = x.reshape(R, W)                       # row-major -> pure bitcast, no HBM pass

    # Fused affine params packed into one tiny resident (2, W) tensor (single DMA).
    scale = inv_std.astype(jnp.float32)
    bias = (-mean.astype(jnp.float32)) * scale
    params = jnp.stack([jnp.tile(scale, group), jnp.tile(bias, group)], axis=0)

    # ---- Balanced row tiling -------------------------------------------------
    in_bytes = jnp.dtype(x.dtype).itemsize
    max_rows = max(8, (target_block_bytes // (W * in_bytes)) // 8 * 8)
    num_tiles = pl.cdiv(R, max_rows)
    if num_tiles == 1 and R >= 16:
        num_tiles = 2                          # >=2 steps so megacore (v7x) can split
    if num_tiles == 1:
        tile_r = R                             # full-dim block (legal for any R)
    else:
        tile_r = ((pl.cdiv(R, num_tiles) + 7) // 8) * 8
    grid = (pl.cdiv(R, tile_r),)               # last block may be partial: Pallas
                                               # masks OOB writes, no HBM padding.

    y2 = pl.pallas_call(
        _global_mvn_kernel,
        out_shape=jax.ShapeDtypeStruct((R, W), out_dtype),
        grid=grid,
        in_specs=[
            pl.BlockSpec((2, W), lambda i: (0, 0)),        # params: resident constant
            pl.BlockSpec((tile_r, W), lambda i: (i, 0)),   # x row tiles
        ],
        out_specs=pl.BlockSpec((tile_r, W), lambda i: (i, 0)),
        compiler_params=pltpu.CompilerParams(
            dimension_semantics=("parallel",),
            # ~20 MiB double-buffered working set at default block budget; 40 MiB
            # scoped limit leaves headroom on v7x (64 MiB) and is trivial on v5e/v6e.
            vmem_limit_bytes=40 * 1024 * 1024,
        ),
    )(params, x2)

    y = y2.reshape(B, L, D)                    # zero-copy bitcast back
    return y, ilens


if __name__ == "__main__":
    key = jax.random.PRNGKey(0)
    k_x, k_mean, k_std, k_len = jax.random.split(key, 4)

    B, L, D = 2, 8, 80  # feature_len = 80 (module default)

    # "use_generate=True" style parameters.
    mean = jax.random.randint(k_mean, (D,), -20, -10).astype(jnp.float32)
    inv_std = jax.random.randint(k_std, (D,), 1, 6).astype(jnp.float32)

    x = jax.random.normal(k_x, (B, L, D), dtype=jnp.float32) * 5.0 - 15.0
    ilens = jax.random.randint(k_len, (B,), 1, L + 1).astype(jnp.int32)

    y, ilens_out = global_mvn(x, mean, inv_std, ilens)
    y = jax.block_until_ready(y)

    y_ref = ((x - mean[None, None, :]) * inv_std[None, None, :]).astype(jnp.float32)
    assert y.shape == (B, L, D) and y.dtype == jnp.float32
    assert jnp.allclose(y, y_ref, atol=1e-3, rtol=1e-5)
    assert jnp.array_equal(ilens_out, ilens)

    # Multi-step grid + partial last block + N not divisible by 16 (group falls to 4).
    B2, L2 = 3, 700  # N = 2100 -> group 4, W = 320, R = 525
    x_big = jax.random.normal(jax.random.PRNGKey(1), (B2, L2, D), dtype=jnp.float32)
    y_big, _ = global_mvn(x_big, mean, inv_std, None, target_block_bytes=64 * 1024)
    y_big = jax.block_until_ready(y_big)
    y_big_ref = ((x_big - mean[None, None, :]) * inv_std[None, None, :]).astype(jnp.float32)
    assert jnp.allclose(y_big, y_big_ref, atol=1e-3, rtol=1e-5)

    # Odd N falls back to group = 1 (W = D); still zero-copy and correct.
    x_odd = jax.random.normal(jax.random.PRNGKey(2), (1, 7, D), dtype=jnp.float32)
    y_odd, _ = global_mvn(x_odd, mean, inv_std, None)
    y_odd = jax.block_until_ready(y_odd)
    y_odd_ref = ((x_odd - mean[None, None, :]) * inv_std[None, None, :]).astype(jnp.float32)
    assert jnp.allclose(y_odd, y_odd_ref, atol=1e-3, rtol=1e-5)

    # Optional narrower output dtype behind the flag (cuts write traffic).
    y_bf16, _ = global_mvn(x_big, mean, inv_std, None, out_dtype=jnp.bfloat16)
    y_bf16 = jax.block_until_ready(y_bf16)
    assert y_bf16.dtype == jnp.bfloat16
    assert jnp.allclose(y_bf16.astype(jnp.float32), y_big_ref, atol=1.0, rtol=5e-2)

    print("KERNEL_OK")
</pallas_src>

<mosaic_0001>
module attributes {stable_mosaic.version = 11 : i64} {
  func.func @_global_mvn_kernel(%arg0: i32, %arg1: memref<2x1280xf32, #tpu.memory_space<vmem>>, %arg2: memref<1x1280xf32, #tpu.memory_space<vmem>>, %arg3: memref<1x1280xf32, #tpu.memory_space<vmem>>) attributes {dimension_semantics = [#tpu.dimension_semantics<parallel>], iteration_bounds = array<i64: 1>, scalar_prefetch = 0 : i64, scratch_operands = 0 : i64, tpu.core_type = #tpu.core_type<tc>, window_params = [{pipeline_mode = #tpu.pipeline_mode<synchronous>, transform_indices = @transform_0, window_bounds = array<i64: 2, 1280>}, {transform_indices = @transform_1, window_bounds = array<i64: 1, 1280>}, {transform_indices = @transform_2, window_bounds = array<i64: 1, 1280>}]} {
    %c0 = arith.constant 0 : index
    %c0_0 = arith.constant 0 : index
    %0 = vector.load %arg1[%c0, %c0_0] : memref<2x1280xf32, #tpu.memory_space<vmem>>, vector<1x1280xf32>
    %c1 = arith.constant 1 : index
    %c0_1 = arith.constant 0 : index
    %1 = vector.load %arg1[%c1, %c0_1] : memref<2x1280xf32, #tpu.memory_space<vmem>>, vector<1x1280xf32>
    %c0_2 = arith.constant 0 : index
    %c0_3 = arith.constant 0 : index
    %2 = vector.load %arg2[%c0_2, %c0_3] : memref<1x1280xf32, #tpu.memory_space<vmem>>, vector<1x1280xf32>
    %3 = arith.mulf %2, %0 : vector<1x1280xf32>
    %4 = arith.addf %3, %1 : vector<1x1280xf32>
    %c0_4 = arith.constant 0 : index
    %c0_5 = arith.constant 0 : index
    %5 = vector.load %arg3[%c0_4, %c0_5] : memref<1x1280xf32, #tpu.memory_space<vmem>>, vector<1x1280xf32>
    tpu.vector_store %arg3[%c0_4, %c0_5], %4 {strides = array<i32>} : memref<1x1280xf32, #tpu.memory_space<vmem>>, vector<1x1280xf32>,
    return
  }
  func.func @transform_0(%arg0: i32) -> (i32, i32) {
    %c0_i32 = arith.constant 0 : i32
    %c0_i32_0 = arith.constant 0 : i32
    %c0_i32_1 = arith.constant 0 : i32
    return %c0_i32, %c0_i32_0 : i32, i32
  }
  func.func @transform_1(%arg0: i32) -> (i32, i32) {
    %c0_i32 = arith.constant 0 : i32
    %c0_i32_0 = arith.constant 0 : i32
    return %arg0, %c0_i32 : i32, i32
  }
  func.func @transform_2(%arg0: i32) -> (i32, i32) {
    %c0_i32 = arith.constant 0 : i32
    %c0_i32_0 = arith.constant 0 : i32
    return %arg0, %c0_i32 : i32, i32
  }
}

</mosaic_0001>

<llo_original>
// kernel: tpu_custom_call.1
$region0: #{tpu_custom_call.1}
  #allocation0 [shape = 'u32[]', space=smem, size = 0x4, offset = 0x4, fixed_abs, tag = 'smem constant byte address 0x4 - core index']
  #allocation1 [shape = 'u32[144,128]{1,0:T(1,128)}', space=vmem, size = 0x12000, scoped, tag = 'internal scratch']
  %s0 = inlined_call_operand.hbm [shape: f32[2,1280], index: 0, kind: input, shape index: {}]
  %s1 = inlined_call_operand.hbm [shape: f32[1,1280], index: 1, kind: input, shape index: {}]
  %s2 = inlined_call_operand.hbm [shape: f32[1,1280], index: 2, kind: output, shape index: {}]
  %s3 = sld [smem:[#allocation0]]
  $region26: #{tpu_custom_call.1} parent=0
    _
  %s5 = ssub.s32 1, %s3
  %s6 = scalar_select 0, %s5, %s3
  $region1: #{tpu_custom_call.1} parent=0
    #allocation2 [shape = 'u8[10240]{0}', space=vmem, size = 0x2800, scoped, tag = 'input window, operand 0, single buffered']
    #allocation3 [shape = 's32[1]{0}', space=sflag, size = 0x4, scoped, tag = 'scoped memory for tpu_custom_call.1']
    #allocation4 [shape = 's32[1]{0}', space=sflag, size = 0x4, scoped, tag = 'scoped memory for tpu_custom_call.1']
    #allocation5 [shape = 'u8[5120]{0}', space=vmem, size = 0x1400, scoped, tag = 'input window, operand 1, single buffered']
    #allocation6 [shape = 's32[1]{0}', space=sflag, size = 0x4, scoped, tag = 'scoped memory for tpu_custom_call.1']
    #allocation7 [shape = 'u8[5120]{0}', space=vmem, size = 0x1400, scoped, tag = 'output window, operand 0, single buffered']
    %7 = vsyncpa [#allocation3], 0
    %8 = vsyncpa [#allocation6], 0
    %9 = vsyncpa [#allocation4], 0
    // Predicated region
    $region2: #{tpu_custom_call.1} parent=1 // pred_check
      _
    $region3: #{tpu_custom_call.1} parent=1 // pred_check_branch
      %11 = sbr.rel (0) target = $region5
    $region4: #{tpu_custom_call.1} parent=1 // pred_region
      %s13 = ssub.s32 320, 320
      %14 = vsyncadd [#allocation3], %s13
      %s16 = sshll.u32 [#allocation2], 4
      %s17 = int_to_ptr.vmem [resolvable:$true] %s16
      %19 = dma.hbm_to_vmem [thread:$0]  %s0, 320, %s17, [#allocation3]
    $region5: #{tpu_custom_call.1} parent=1 // pred_fallthru
      _
    // Predicated region
    $region6: #{tpu_custom_call.1} parent=1 // pred_check
      _
    $region7: #{tpu_custom_call.1} parent=1 // pred_check_branch
      %21 = sbr.rel (0) target = $region9
    $region8: #{tpu_custom_call.1} parent=1 // pred_region
      %s23 = ssub.s32 160, 160
      %24 = vsyncadd [#allocation6], %s23
      %s26 = sshll.u32 [#allocation5], 4
      %s27 = int_to_ptr.vmem [resolvable:$true] %s26
      %29 = dma.hbm_to_vmem [thread:$0]  %s1, 160, %s27, [#allocation6]
    $region9: #{tpu_custom_call.1} parent=1 // pred_fallthru
      _
    // Predicated region
    $region10: #{tpu_custom_call.1} parent=1 // pred_check
      _
    $region11: #{tpu_custom_call.1} parent=1 // pred_check_branch
      %31 = sbr.rel (0) target = $region13
    $region12: #{tpu_custom_call.1} parent=1 // pred_region
      %32 = dma.done [#allocation3], 320
    $region13: #{tpu_custom_call.1} parent=1 // pred_fallthru
      _
    // Predicated region
    $region14: #{tpu_custom_call.1} parent=1 // pred_check
      _
    $region15: #{tpu_custom_call.1} parent=1 // pred_check_branch
      %34 = sbr.rel (0) target = $region17
    $region16: #{tpu_custom_call.1} parent=1 // pred_region
      %35 = dma.done [#allocation6], 160
    $region17: #{tpu_custom_call.1} parent=1 // pred_fallthru
      _
    %v36 = vld [vmem:[#allocation2] ss:$2 sm:$0xff]
    %s37 = scalar_lea.vmem [#allocation2], 16
    %v38 = vld [vmem:[%s37] ss:$2 sm:$0x3]
    %s39 = scalar_lea.vmem [#allocation2], 1
    %v40 = vld [vmem:[%s39] ss:$2 sm:$0xff]
    %s41 = scalar_lea.vmem [#allocation2], 17
    %v42 = vld [vmem:[%s41] ss:$2 sm:$0x3]
    %v43 = vld [vmem:[#allocation5] sm:$0xff]
    %v44 = vld [vmem:[#allocation5 + $0x8] sm:$0x3]
    %v45 = vmul.f32 %v43, %v36
    %v46 = vmul.f32 %v44, %v38
    %v47 = vadd.f32 %v45, %v40
    %v48 = vadd.f32 %v46, %v42
    %49 = vst [vmem:[#allocation7] sm:$0xff] %v47
    %v50 = vlaneseq
    %vm51 = vcmp.ge.s32.totalorder %v50, 0
    %vm52 = vcmp.lt.s32.totalorder %v50, 256
    %vm53 = vmand %vm51, %vm52
    %54 = vst.msk [vmem:[#allocation7 + $0x8] sm:$0x3] %vm53, %v48
    // Predicated region
    $region18: #{tpu_custom_call.1} parent=1 // pred_check
      _
    $region19: #{tpu_custom_call.1} parent=1 // pred_check_branch
      %56 = sbr.rel (0) target = $region21
    $region20: #{tpu_custom_call.1} parent=1 // pred_region
      %s58 = ssub.s32 160, 160
      %59 = vsyncadd [#allocation4], %s58
      %s61 = sshll.u32 [#allocation7], 4
      %s62 = int_to_ptr.vmem [resolvable:$true] %s61
      %64 = dma.vmem_to_hbm [thread:$0]  %s62, 160, %s2, [#allocation4]
    $region21: #{tpu_custom_call.1} parent=1 // pred_fallthru
      _
    // Predicated region
    $region22: #{tpu_custom_call.1} parent=1 // pred_check
      _
    $region23: #{tpu_custom_call.1} parent=1 // pred_check_branch
      %66 = sbr.rel (0) target = $region25
    $region24: #{tpu_custom_call.1} parent=1 // pred_region
      %67 = dma.done [#allocation4], 160
    $region25: #{tpu_custom_call.1} parent=1 // pred_fallthru
      _
    %68 = vsyncpa [#allocation3], 1
    %69 = vsyncpa [#allocation6], 1
    %70 = vsyncpa [#allocation4], 1

</llo_original>
